<compile_context>
chip_gen: v6e
topology: v6e:2x2x1
jax: 0.10.0
libtpu: 0.0.40
codegen_flags: <defaults>
</compile_context>

<pallas_src>
from functools import partial

import jax
import jax.numpy as jnp
import numpy as np
from jax.experimental import pallas as pl
from jax.experimental.pallas import tpu as pltpu


def residual_block_kernel(xpad_ref, w1_ref, b1_ref, w2_ref, b2_ref, out_ref,
                          *, H, W, C):
    # xpad_ref : (1, H+2, (W+2)*C)  zero-padded input, width*channels flattened (lane axis)
    # w*_ref   : (3*(W+2)*C, W*C)   banded im2row weights -> one MXU dot per conv
    # b*_ref   : (1, W*C)           bias tiled per output pixel
    # out_ref  : (1, H, W*C)
    x = xpad_ref[0]                                        # (H+2, (W+2)*C)
    identity = x[1:H + 1, C:(W + 1) * C]                   # (H, W*C) pre-activation skip

    # activ1 (ReLU). relu(0) == 0 so applying it to the padded tensor is exact.
    a1 = jnp.maximum(x, 0.0)

    # conv1: gather the 3 row-shifted views along lanes -> single matmul.
    p1 = jnp.concatenate([a1[ky:ky + H, :] for ky in range(3)], axis=1)
    y1 = jnp.dot(p1, w1_ref[...], preferred_element_type=jnp.float32) + b1_ref[...]

    # activ2 (ReLU)
    a2 = jnp.maximum(y1, 0.0)                              # (H, W*C)

    # zero-pad the mid activation as a value (no VMEM scratch round trip).
    zc = jnp.zeros((H, C), jnp.float32)
    zr = jnp.zeros((1, (W + 2) * C), jnp.float32)
    a2p = jnp.concatenate([zc, a2, zc], axis=1)            # (H, (W+2)*C)
    a2p = jnp.concatenate([zr, a2p, zr], axis=0)           # (H+2, (W+2)*C)

    # conv2: same single-matmul structure.
    p2 = jnp.concatenate([a2p[ky:ky + H, :] for ky in range(3)], axis=1)
    y2 = jnp.dot(p2, w2_ref[...], preferred_element_type=jnp.float32) + b2_ref[...]

    # residual add, lane-dense store.
    out_ref[0] = y2 + identity


def _build_big_weight(w, W):
    """PyTorch (Cout, Cin, 3, 3) conv weight -> banded im2row matrix.

    big[ky*(W+2)*Cin + p*Cin + c, x*Cout + co] = w[co, c, ky, kx]  where p == x + kx,
    so that  patch(H, 3*(W+2)*Cin) @ big  computes the 3x3 'same' conv with the
    (W+2)*Cin-flattened, zero-padded activation layout used in the kernel.
    """
    Cout, Cin, KH, KW = w.shape
    x_idx = jnp.arange(W)
    p_idx = jnp.arange(W + 2)
    k_idx = jnp.arange(KW)
    mask = (p_idx[None, :, None] ==
            (x_idx[None, None, :] + k_idx[:, None, None])).astype(w.dtype)  # (KW, W+2, W)
    taps = jnp.transpose(w, (2, 3, 1, 0))                                   # (KH, KW, Cin, Cout)
    big = jnp.einsum('ykco,kpx->ypcxo', taps, mask)                         # (KH, W+2, Cin, W, Cout)
    return big.reshape(KH * (W + 2) * Cin, W * Cout)


def residual_block_kn(x_nchw, w1, b1, w2, b2):
    """x_nchw: (N, C, H, W). w*: (Cout, Cin, 3, 3) PyTorch layout. b*: (Cout,)."""
    N, Cin, H, W = x_nchw.shape
    Cout = w1.shape[0]
    assert Cin == Cout, "residual add requires in_channels == out_channels"

    # NCHW -> NHWC, zero pad H/W by 1, flatten (W+2, C) onto the lane axis (glue).
    x = jnp.transpose(x_nchw, (0, 2, 3, 1)).astype(jnp.float32)
    xpad = jnp.pad(x, ((0, 0), (1, 1), (1, 1), (0, 0)))
    xpad_flat = xpad.reshape(N, H + 2, (W + 2) * Cin)

    # Banded im2row weights + per-pixel-tiled biases (built once, plain JAX).
    w1_big = _build_big_weight(w1.astype(jnp.float32), W)      # (3*(W+2)*Cin, W*Cout)
    w2_big = _build_big_weight(w2.astype(jnp.float32), W)
    b1_t = jnp.tile(b1.astype(jnp.float32), (W,)).reshape(1, W * Cout)
    b2_t = jnp.tile(b2.astype(jnp.float32), (W,)).reshape(1, W * Cout)

    K1 = 3 * (W + 2) * Cin
    K2 = 3 * (W + 2) * Cout

    out_flat = pl.pallas_call(
        partial(residual_block_kernel, H=H, W=W, C=Cin),
        out_shape=jax.ShapeDtypeStruct((N, H, W * Cout), jnp.float32),
        grid=(N,),
        in_specs=[
            pl.BlockSpec((1, H + 2, (W + 2) * Cin), lambda n: (n, 0, 0)),
            pl.BlockSpec((K1, W * Cout), lambda n: (0, 0)),
            pl.BlockSpec((1, W * Cout), lambda n: (0, 0)),
            pl.BlockSpec((K2, W * Cout), lambda n: (0, 0)),
            pl.BlockSpec((1, W * Cout), lambda n: (0, 0)),
        ],
        out_specs=pl.BlockSpec((1, H, W * Cout), lambda n: (n, 0, 0)),
        compiler_params=pltpu.CompilerParams(
            dimension_semantics=("parallel",)),
    )(xpad_flat, w1_big, b1_t, w2_big, b2_t)

    # (N, H, W*C) -> NCHW
    out = out_flat.reshape(N, H, W, Cout)
    return jnp.transpose(out, (0, 3, 1, 2))


def _reference(x_nchw, w1, b1, w2, b2):
    """Pure-JAX NCHW reference mirroring the PyTorch forward."""
    def conv(x, w, b):
        y = jax.lax.conv_general_dilated(
            x, w, window_strides=(1, 1), padding=((1, 1), (1, 1)),
            dimension_numbers=("NCHW", "OIHW", "NCHW"))
        return y + b.reshape(1, -1, 1, 1)

    identity = x_nchw
    out = jnp.maximum(x_nchw, 0.0)
    out = conv(out, w1, b1)
    out = jnp.maximum(out, 0.0)
    out = conv(out, w2, b2)
    return out + identity


if __name__ == "__main__":
    key = jax.random.PRNGKey(0)
    kx, kw1, kb1, kw2, kb2 = jax.random.split(key, 5)

    N, C, H, W = 2, 4, 16, 16   # in_channels == out_channels (residual add)
    x = jax.random.normal(kx, (N, C, H, W), jnp.float32)

    # Deterministic synthetic parameters (KNConv2d weight/bias shapes)
    w1 = 0.1 * jax.random.normal(kw1, (C, C, 3, 3), jnp.float32)
    b1 = 0.1 * jax.random.normal(kb1, (C,), jnp.float32)
    w2 = 0.1 * jax.random.normal(kw2, (C, C, 3, 3), jnp.float32)
    b2 = 0.1 * jax.random.normal(kb2, (C,), jnp.float32)

    out = residual_block_kn(x, w1, b1, w2, b2)
    out = jax.block_until_ready(out)

    ref = jax.block_until_ready(_reference(x, w1, b1, w2, b2))
    np.testing.assert_allclose(np.asarray(out), np.asarray(ref),
                               rtol=2e-2, atol=2e-2)

    print("KERNEL_OK")
</pallas_src>

<mosaic_0001>
module attributes {stable_mosaic.version = 11 : i64} {
  func.func @residual_block_kernel(%arg0: i32, %arg1: memref<1x18x72xf32, #tpu.memory_space<vmem>>, %arg2: memref<216x64xf32, #tpu.memory_space<vmem>>, %arg3: memref<1x64xf32, #tpu.memory_space<vmem>>, %arg4: memref<216x64xf32, #tpu.memory_space<vmem>>, %arg5: memref<1x64xf32, #tpu.memory_space<vmem>>, %arg6: memref<1x16x64xf32, #tpu.memory_space<vmem>>) attributes {dimension_semantics = [#tpu.dimension_semantics<parallel>], iteration_bounds = array<i64: 2>, scalar_prefetch = 0 : i64, scratch_operands = 0 : i64, tpu.core_type = #tpu.core_type<tc>, window_params = [{transform_indices = @transform_0, window_bounds = array<i64: 1, 18, 72>}, {pipeline_mode = #tpu.pipeline_mode<synchronous>, transform_indices = @transform_1, window_bounds = array<i64: 216, 64>}, {pipeline_mode = #tpu.pipeline_mode<synchronous>, transform_indices = @transform_2, window_bounds = array<i64: 1, 64>}, {pipeline_mode = #tpu.pipeline_mode<synchronous>, transform_indices = @transform_3, window_bounds = array<i64: 216, 64>}, {pipeline_mode = #tpu.pipeline_mode<synchronous>, transform_indices = @transform_4, window_bounds = array<i64: 1, 64>}, {transform_indices = @transform_5, window_bounds = array<i64: 1, 16, 64>}]} {
    %c0 = arith.constant 0 : index
    %c0_0 = arith.constant 0 : index
    %c0_1 = arith.constant 0 : index
    %0 = vector.load %arg1[%c0, %c0_0, %c0_1] : memref<1x18x72xf32, #tpu.memory_space<vmem>>, vector<1x18x72xf32>
    %1 = vector.shape_cast %0 : vector<1x18x72xf32> to vector<18x72xf32>
    %2 = vector.extract_strided_slice %1 {offsets = [1, 4], sizes = [16, 64], strides = [1, 1]} : vector<18x72xf32> to vector<16x64xf32>
    %cst = arith.constant 0.000000e+00 : f32
    %3 = vector.broadcast %cst : f32 to vector<18x72xf32>
    %4 = arith.maximumf %1, %3 : vector<18x72xf32>
    %5 = vector.extract_strided_slice %4 {offsets = [0, 0], sizes = [16, 72], strides = [1, 1]} : vector<18x72xf32> to vector<16x72xf32>
    %6 = vector.extract_strided_slice %4 {offsets = [1, 0], sizes = [16, 72], strides = [1, 1]} : vector<18x72xf32> to vector<16x72xf32>
    %7 = vector.extract_strided_slice %4 {offsets = [2, 0], sizes = [16, 72], strides = [1, 1]} : vector<18x72xf32> to vector<16x72xf32>
    %8 = tpu.concatenate %5, %6, %7 in 1 : vector<16x72xf32>, vector<16x72xf32>, vector<16x72xf32> -> vector<16x216xf32>
    %c0_2 = arith.constant 0 : index
    %c0_3 = arith.constant 0 : index
    %9 = vector.load %arg2[%c0_2, %c0_3] : memref<216x64xf32, #tpu.memory_space<vmem>>, vector<216x64xf32>
    %cst_4 = arith.constant dense<0.000000e+00> : vector<16x64xf32>
    %10 = tpu.matmul %8, %9, %cst_4 {dimension_numbers = #tpu.dot_dimension_numbers<[1], [0], [0], [1], [0, 0, 1, 1], [], []>} : vector<16x216xf32>, vector<216x64xf32>, vector<16x64xf32> -> vector<16x64xf32>
    %c0_5 = arith.constant 0 : index
    %c0_6 = arith.constant 0 : index
    %11 = vector.load %arg3[%c0_5, %c0_6] : memref<1x64xf32, #tpu.memory_space<vmem>>, vector<1x64xf32>
    %12 = vector.broadcast %11 : vector<1x64xf32> to vector<16x64xf32>
    %13 = arith.addf %10, %12 : vector<16x64xf32>
    %cst_7 = arith.constant 0.000000e+00 : f32
    %14 = vector.broadcast %cst_7 : f32 to vector<16x64xf32>
    %15 = arith.maximumf %13, %14 : vector<16x64xf32>
    %cst_8 = arith.constant 0.000000e+00 : f32
    %16 = vector.broadcast %cst_8 : f32 to vector<16x4xf32>
    %cst_9 = arith.constant 0.000000e+00 : f32
    %17 = vector.broadcast %cst_9 : f32 to vector<1x72xf32>
    %18 = tpu.concatenate %16, %15, %16 in 1 : vector<16x4xf32>, vector<16x64xf32>, vector<16x4xf32> -> vector<16x72xf32>
    %19 = tpu.concatenate %17, %18, %17 in 0 : vector<1x72xf32>, vector<16x72xf32>, vector<1x72xf32> -> vector<18x72xf32>
    %20 = vector.extract_strided_slice %19 {offsets = [0, 0], sizes = [16, 72], strides = [1, 1]} : vector<18x72xf32> to vector<16x72xf32>
    %21 = vector.extract_strided_slice %19 {offsets = [1, 0], sizes = [16, 72], strides = [1, 1]} : vector<18x72xf32> to vector<16x72xf32>
    %22 = vector.extract_strided_slice %19 {offsets = [2, 0], sizes = [16, 72], strides = [1, 1]} : vector<18x72xf32> to vector<16x72xf32>
    %23 = tpu.concatenate %20, %21, %22 in 1 : vector<16x72xf32>, vector<16x72xf32>, vector<16x72xf32> -> vector<16x216xf32>
    %c0_10 = arith.constant 0 : index
    %c0_11 = arith.constant 0 : index
    %24 = vector.load %arg4[%c0_10, %c0_11] : memref<216x64xf32, #tpu.memory_space<vmem>>, vector<216x64xf32>
    %cst_12 = arith.constant dense<0.000000e+00> : vector<16x64xf32>
    %25 = tpu.matmul %23, %24, %cst_12 {dimension_numbers = #tpu.dot_dimension_numbers<[1], [0], [0], [1], [0, 0, 1, 1], [], []>} : vector<16x216xf32>, vector<216x64xf32>, vector<16x64xf32> -> vector<16x64xf32>
    %c0_13 = arith.constant 0 : index
    %c0_14 = arith.constant 0 : index
    %26 = vector.load %arg5[%c0_13, %c0_14] : memref<1x64xf32, #tpu.memory_space<vmem>>, vector<1x64xf32>
    %27 = vector.broadcast %26 : vector<1x64xf32> to vector<16x64xf32>
    %28 = arith.addf %25, %27 : vector<16x64xf32>
    %29 = arith.addf %28, %2 : vector<16x64xf32>
    %c0_15 = arith.constant 0 : index
    %c0_16 = arith.constant 0 : index
    %c0_17 = arith.constant 0 : index
    %30 = vector.load %arg6[%c0_15, %c0_16, %c0_17] : memref<1x16x64xf32, #tpu.memory_space<vmem>>, vector<1x16x64xf32>
    %31 = vector.shape_cast %30 : vector<1x16x64xf32> to vector<16x64xf32>
    %32 = vector.shape_cast %29 : vector<16x64xf32> to vector<1x16x64xf32>
    tpu.vector_store %arg6[%c0_15, %c0_16, %c0_17], %32 {strides = array<i32>} : memref<1x16x64xf32, #tpu.memory_space<vmem>>, vector<1x16x64xf32>,
    return
  }
  func.func @transform_0(%arg0: i32) -> (i32, i32, i32) {
    %c0_i32 = arith.constant 0 : i32
    %c0_i32_0 = arith.constant 0 : i32
    %c0_i32_1 = arith.constant 0 : i32
    return %arg0, %c0_i32, %c0_i32_0 : i32, i32, i32
  }
  func.func @transform_1(%arg0: i32) -> (i32, i32) {
    %c0_i32 = arith.constant 0 : i32
    %c0_i32_0 = arith.constant 0 : i32
    %c0_i32_1 = arith.constant 0 : i32
    return %c0_i32, %c0_i32_0 : i32, i32
  }
  func.func @transform_2(%arg0: i32) -> (i32, i32) {
    %c0_i32 = arith.constant 0 : i32
    %c0_i32_0 = arith.constant 0 : i32
    %c0_i32_1 = arith.constant 0 : i32
    return %c0_i32, %c0_i32_0 : i32, i32
  }
  func.func @transform_3(%arg0: i32) -> (i32, i32) {
    %c0_i32 = arith.constant 0 : i32
    %c0_i32_0 = arith.constant 0 : i32
    %c0_i32_1 = arith.constant 0 : i32
    return %c0_i32, %c0_i32_0 : i32, i32
  }
  func.func @transform_4(%arg0: i32) -> (i32, i32) {
    %c0_i32 = arith.constant 0 : i32
    %c0_i32_0 = arith.constant 0 : i32
    %c0_i32_1 = arith.constant 0 : i32
    return %c0_i32, %c0_i32_0 : i32, i32
  }
  func.func @transform_5(%arg0: i32) -> (i32, i32, i32) {
    %c0_i32 = arith.constant 0 : i32
    %c0_i32_0 = arith.constant 0 : i32
    %c0_i32_1 = arith.constant 0 : i32
    return %arg0, %c0_i32, %c0_i32_0 : i32, i32, i32
  }
}

</mosaic_0001>

<llo_original>
// kernel: tpu_custom_call.1
$region0: #{tpu_custom_call.1}
  #allocation0 [shape = 'u32[]', space=smem, size = 0x4, offset = 0x4, fixed_abs, tag = 'smem constant byte address 0x4 - core index']
  #allocation1 [shape = 'u32[144,128]{1,0:T(1,128)}', space=vmem, size = 0x12000, scoped, tag = 'internal scratch']
  %s0 = inlined_call_operand.vmem [shape: f32[2,18,72], index: 0, kind: input, shape index: {}]
  %s1 = inlined_call_operand.vmem [shape: f32[216,64], index: 1, kind: input, shape index: {}]
  %s2 = inlined_call_operand.vmem [shape: f32[1,64], index: 2, kind: input, shape index: {}]
  %s3 = inlined_call_operand.vmem [shape: f32[216,64], index: 3, kind: input, shape index: {}]
  %s4 = inlined_call_operand.vmem [shape: f32[1,64], index: 4, kind: input, shape index: {}]
  %s5 = inlined_call_operand.hbm [shape: f32[2,16,64], index: 5, kind: output, shape index: {}]
  %s6 = sld [smem:[#allocation0]]
  $region53: #{tpu_custom_call.1} parent=0
    _
  %s8 = ssub.s32 1, %s6
  %s9 = scalar_select 0, %s8, %s6
  $region1: #{tpu_custom_call.1} parent=0
    #allocation2 [shape = 'u8[16384]{0}', space=vmem, size = 0x4000, scoped, tag = 'output window, operand 0']
    #allocation3 [shape = 's32[2]{0}', space=sflag, size = 0x8, scoped, tag = 'scoped memory for tpu_custom_call.1']
    %10 = vsyncpa [#allocation3], 0
    %s11 = scalar_lea.sflag [#allocation3], 1
    %12 = vsyncpa %s11, 0
    loop: start=0, step=1, limit=4
    $region2: #{tpu_custom_call.1} parent=1 // loop_pre_header
      _
    $region3: #{tpu_custom_call.1} parent=1 // loop_header
      %s14 = sphi 0, %s18
      %p15 = scmp.ge.s32.totalorder %s14, 4
      %s24 = sphi 0, %s26
      %s27 = sphi 0, %s24
      %s28 = sphi 0, %s27
      %s44 = sphi 0, %s28
      %s48 = sphi 0, %s48
      %s50 = sphi 0, %s48
      %s51 = sphi 0, %s50
      %s65 = sphi 0, %s51
      %s69 = sphi 0, %s69
      %s71 = sphi 0, %s69
      %s72 = sphi 0, %s71
      %s86 = sphi 0, %s72
      %s90 = sphi 0, %s90
      %s92 = sphi 0, %s90
      %s93 = sphi 0, %s92
      %s107 = sphi 0, %s93
      %s111 = sphi 0, %s111
      %s113 = sphi 0, %s111
      %s114 = sphi 0, %s113
      %s128 = sphi 0, %s114
      %s134 = sphi 0, %s136
      %s137 = sphi 0, %s134
      %s138 = sphi 0, %s137
      %s154 = sphi 0, %s138
    $region4: #{tpu_custom_call.1} parent=1 // loop_header_branch
      %17 = sbr.rel (%p15) target = $region8
    $region5: #{tpu_custom_call.1} parent=1 // loop_body
      %s19 = ssub.s32 %s14, 1
      %s20 = ssub.s32 %s14, 2
      %s21 = sadd.s32 %s14, 1
      %s22 = ssub.s32 %s14, %s21
      %p23 = scmp.eq.s32.totalorder %s22, 0
      %s25 = sadd.s32 %s24, 1
      %s26 = scalar_select %p23, %s24, %s25
      %p29 = pneg %p23
      %p30 = scmp.eq.s32.totalorder %s14, 1
      %p31 = por %p29, %p30
      %p32 = scmp.ne.s32.totalorder %s24, %s27
      %p33 = scmp.eq.s32.totalorder %s14, 0
      %p34 = por %p32, %p33
      %p35 = scmp.ne.s32.totalorder %s24, %s27
      %p36 = scmp.eq.s32.totalorder %s19, 1
      %p37 = por %p35, %p36
      %p38 = scmp.ne.s32.totalorder %s27, %s28
      %p39 = scmp.eq.s32.totalorder %s19, 0
      %p40 = por %p38, %p39
      %p41 = scmp.ne.s32.totalorder %s27, %s28
      %p42 = scmp.eq.s32.totalorder %s20, 1
      %p43 = por %p41, %p42
      %p45 = scmp.ne.s32.totalorder %s28, %s44
      %p46 = scmp.eq.s32.totalorder %s20, 0
      %p47 = por %p45, %p46
      %s49 = sadd.s32 %s48, 1
      %p52 = scmp.eq.s32.totalorder %s14, 1
      %p53 = scmp.ne.s32.totalorder %s48, %s50
      %p54 = scmp.eq.s32.totalorder %s14, 0
      %p55 = por %p53, %p54
      %p56 = scmp.ne.s32.totalorder %s48, %s50
      %p57 = scmp.eq.s32.totalorder %s19, 1
      %p58 = por %p56, %p57
      %p59 = scmp.ne.s32.totalorder %s50, %s51
      %p60 = scmp.eq.s32.totalorder %s19, 0
      %p61 = por %p59, %p60
      %p62 = scmp.ne.s32.totalorder %s50, %s51
      %p63 = scmp.eq.s32.totalorder %s20, 1
      %p64 = por %p62, %p63
      %p66 = scmp.ne.s32.totalorder %s51, %s65
      %p67 = scmp.eq.s32.totalorder %s20, 0
      %p68 = por %p66, %p67
      %s70 = sadd.s32 %s69, 1
      %p73 = scmp.eq.s32.totalorder %s14, 1
      %p74 = scmp.ne.s32.totalorder %s69, %s71
      %p75 = scmp.eq.s32.totalorder %s14, 0
      %p76 = por %p74, %p75
      %p77 = scmp.ne.s32.totalorder %s69, %s71
      %p78 = scmp.eq.s32.totalorder %s19, 1
      %p79 = por %p77, %p78
      %p80 = scmp.ne.s32.totalorder %s71, %s72
      %p81 = scmp.eq.s32.totalorder %s19, 0
      %p82 = por %p80, %p81
      %p83 = scmp.ne.s32.totalorder %s71, %s72
      %p84 = scmp.eq.s32.totalorder %s20, 1
      %p85 = por %p83, %p84
      %p87 = scmp.ne.s32.totalorder %s72, %s86
      %p88 = scmp.eq.s32.totalorder %s20, 0
      %p89 = por %p87, %p88
      %s91 = sadd.s32 %s90, 1
      %p94 = scmp.eq.s32.totalorder %s14, 1
      %p95 = scmp.ne.s32.totalorder %s90, %s92
      %p96 = scmp.eq.s32.totalorder %s14, 0
      %p97 = por %p95, %p96
      %p98 = scmp.ne.s32.totalorder %s90, %s92
      %p99 = scmp.eq.s32.totalorder %s19, 1
      %p100 = por %p98, %p99
      %p101 = scmp.ne.s32.totalorder %s92, %s93
      %p102 = scmp.eq.s32.totalorder %s19, 0
      %p103 = por %p101, %p102
      %p104 = scmp.ne.s32.totalorder %s92, %s93
      %p105 = scmp.eq.s32.totalorder %s20, 1
      %p106 = por %p104, %p105
      %p108 = scmp.ne.s32.totalorder %s93, %s107
      %p109 = scmp.eq.s32.totalorder %s20, 0
      %p110 = por %p108, %p109
      %s112 = sadd.s32 %s111, 1
      %p115 = scmp.eq.s32.totalorder %s14, 1
      %p116 = scmp.ne.s32.totalorder %s111, %s113
      %p117 = scmp.eq.s32.totalorder %s14, 0
      %p118 = por %p116, %p117
      %p119 = scmp.ne.s32.totalorder %s111, %s113
      %p120 = scmp.eq.s32.totalorder %s19, 1
      %p121 = por %p119, %p120
      %p122 = scmp.ne.s32.totalorder %s113, %s114
      %p123 = scmp.eq.s32.totalorder %s19, 0
      %p124 = por %p122, %p123
      %p125 = scmp.ne.s32.totalorder %s113, %s114
      %p126 = scmp.eq.s32.totalorder %s20, 1
      %p127 = por %p125, %p126
      %p129 = scmp.ne.s32.totalorder %s114, %s128
      %p130 = scmp.eq.s32.totalorder %s20, 0
      %p131 = por %p129, %p130
      %s132 = ssub.s32 %s14, %s21
      %p133 = scmp.eq.s32.totalorder %s132, 0
      %s135 = sadd.s32 %s134, 1
      %s136 = scalar_select %p133, %s134, %s135
      %p139 = pneg %p133
      %p140 = scmp.eq.s32.totalorder %s14, 1
      %p141 = por %p139, %p140
      %p142 = scmp.ne.s32.totalorder %s134, %s137
      %p143 = scmp.eq.s32.totalorder %s14, 0
      %p144 = por %p142, %p143
      %p145 = scmp.ne.s32.totalorder %s134, %s137
      %p146 = scmp.eq.s32.totalorder %s19, 1
      %p147 = por %p145, %p146
      %p148 = scmp.ne.s32.totalorder %s137, %s138
      %p149 = scmp.eq.s32.totalorder %s19, 0
      %p150 = por %p148, %p149
      %p151 = scmp.ne.s32.totalorder %s137, %s138
      %p152 = scmp.eq.s32.totalorder %s20, 1
      %p153 = por %p151, %p152
      %p155 = scmp.ne.s32.totalorder %s138, %s154
      %p156 = scmp.eq.s32.totalorder %s20, 0
      %p157 = por %p155, %p156
      %p158 = scmp.le.s32.totalorder 1, %s14
      %p159 = scmp.lt.s32.totalorder %s14, 3
      %p160 = pnand %p158, %p159
      %p161 = pneg %p160
      // Predicated region
      $region9: #{tpu_custom_call.1} parent=5 // pred_check
        _
      $region10: #{tpu_custom_call.1} parent=5 // pred_check_branch
        %163 = sbr.rel (%p160) target = $region12
      $region11: #{tpu_custom_call.1} parent=5 // pred_region
        %s164 = ssub.s32 %s14, 1
        // Predicated region
        $region13: #{tpu_custom_call.1} parent=11 // pred_check
          %p165 = pneg %p61
        $region14: #{tpu_custom_call.1} parent=11 // pred_check_branch
          %167 = sbr.rel (%p165) target = $region16
        $region15: #{tpu_custom_call.1} parent=11 // pred_region
          _
        $region16: #{tpu_custom_call.1} parent=11 // pred_fallthru
          _
        // Predicated region
        $region17: #{tpu_custom_call.1} parent=11 // pred_check
          %p168 = pneg %p82
        $region18: #{tpu_custom_call.1} parent=11 // pred_check_branch
          %170 = sbr.rel (%p168) target = $region20
        $region19: #{tpu_custom_call.1} parent=11 // pred_region
          _
        $region20: #{tpu_custom_call.1} parent=11 // pred_fallthru
          _
        // Predicated region
        $region21: #{tpu_custom_call.1} parent=11 // pred_check
          %p171 = pneg %p103
        $region22: #{tpu_custom_call.1} parent=11 // pred_check_branch
          %173 = sbr.rel (%p171) target = $region24
        $region23: #{tpu_custom_call.1} parent=11 // pred_region
          _
        $region24: #{tpu_custom_call.1} parent=11 // pred_fallthru
          _
        // Predicated region
        $region25: #{tpu_custom_call.1} parent=11 // pred_check
          %p174 = pneg %p124
        $region26: #{tpu_custom_call.1} parent=11 // pred_check_branch
          %176 = sbr.rel (%p174) target = $region28
        $region27: #{tpu_custom_call.1} parent=11 // pred_region
          _
        $region28: #{tpu_custom_call.1} parent=11 // pred_fallthru
          _
      $region12: #{tpu_custom_call.1} parent=5 // pred_fallthru
        _
      %p177 = scmp.lt.s32.totalorder %s14, 2
      // Predicated region
      $region29: #{tpu_custom_call.1} parent=5 // pred_check
        %p178 = pneg %p177
      $region30: #{tpu_custom_call.1} parent=5 // pred_check_branch
        %180 = sbr.rel (%p178) target = $region32
      $region31: #{tpu_custom_call.1} parent=5 // pred_region
        // Predicated region
        $region33: #{tpu_custom_call.1} parent=31 // pred_check
          %p181 = pneg %p34
        $region34: #{tpu_custom_call.1} parent=31 // pred_check_branch
          %183 = sbr.rel (%p181) target = $region36
        $region35: #{tpu_custom_call.1} parent=31 // pred_region
          %p184 = scmp.lt.s32.totalorder %s14, 1
          %s185 = scalar_select %p184, %s14, 1
          %s186 = smul.addr %s185, 3
          %s187 = smul.addr %s186, 8
          %s188 = scalar_lea.vmem %s0, %s187
        $region36: #{tpu_custom_call.1} parent=31 // pred_fallthru
          _
      $region32: #{tpu_custom_call.1} parent=5 // pred_fallthru
        _
      %p189 = scmp.le.s32.totalorder 1, %s14
      %p190 = scmp.lt.s32.totalorder %s14, 3
      %p191 = pnand %p189, %p190
      %p192 = pneg %p191
      // Predicated region
      $region37: #{tpu_custom_call.1} parent=5 // pred_check
        _
      $region38: #{tpu_custom_call.1} parent=5 // pred_check_branch
        %194 = sbr.rel (%p191) target = $region40
      $region39: #{tpu_custom_call.1} parent=5 // pred_region
        %s195 = ssub.s32 %s14, 1
        %p196 = scmp.lt.s32.totalorder %s19, 1
        %s197 = scalar_select %p196, %s19, 1
        %s198 = smul.addr %s197, 3
        %s199 = smul.addr %s198, 8
        %s200 = scalar_lea.vmem %s0, %s199
        %p201 = pneg %p40
        %p202 = pneg %p37
        %p203 = pneg %p61
        %p204 = pneg %p58
        %p205 = pneg %p82
        %p206 = pneg %p79
        %p207 = pneg %p103
        %p208 = pneg %p100
        %p209 = pneg %p124
        %p210 = pneg %p121
        %p211 = pneg %p150
        %p212 = pneg %p147
        %s213 = sand.u32 %s137, 1
        %s214 = scalar_lea.sflag [#allocation3], %s213
        %s215 = sand.u32 %s137, 1
        %s216 = smul.addr %s215, 16
        %s217 = scalar_lea.vmem [#allocation2], %s216
        %p218 = scmp.lt.s32.totalorder %s19, 1
        %s219 = scalar_select %p218, %s19, 1
        %s220 = smul.addr %s219, 3
        %s221 = smul.addr %s220, 8
        %s222 = scalar_lea.vmem %s0, %s221
        %v223 = vld [vmem:[%s222] sm:$0xff]
        %v224 = vld [vmem:[%s222 + $0x8] sm:$0xff]
        %v225 = vld [vmem:[%s222 + $0x10] sm:$0x3]
        %v226 = vmax.f32 %v223, 0.0
        %v227 = vmax.f32 %v224, 0.0
        %v228 = vmax.f32 %v225, 0.0
        %vm232 = vcmask 1046528
        %v233 = vrot.slane %v226, 1
        %v234 = vrot.slane %v227, 1
        %v235 = vsel %vm232, %v233, %v234
        %v236 = vrot.slane %v228, 1
        %v237 = vsel %vm232, %v234, %v236
        %238 = vrot.lane.b32.xlu0 %v235, 72
        %v239 = vpop.permute.xlu0 %238
        %240 = vrot.lane.b32.xlu0 %v237, 72
        %v241 = vpop.permute.xlu0 %240
        %vm244 = vcmask 1045504
        %v245 = vrot.slane %v226, 2
        %v246 = vrot.slane %v227, 2
        %v247 = vsel %vm244, %v245, %v246
        %v248 = vrot.slane %v228, 2
        %v249 = vsel %vm244, %v246, %v248
        %250 = vrot.lane.b32.xlu0 %v247, 16
        %v251 = vpop.permute.xlu0 %250
        %252 = vrot.lane.b32.xlu0 %v249, 16
        %v253 = vpop.permute.xlu0 %252
        %vm256 = vcmask 588800
        %v257 = vsel %vm256, %v226, %v239
        %v258 = vsel %vm256, %v227, %v241
        %vm259 = vcmask 130048
        %v260 = vsel %vm259, %v239, %v251
        %v261 = vsel %vm259, %v241, %v253
        %v262 = vld [vmem:[%s1] sm:$0xff]
        %v263 = vld [vmem:[%s1 + $0x8] sm:$0xff]
        %v264 = vld [vmem:[%s1 + $0x10] sm:$0xff]
        %v265 = vld [vmem:[%s1 + $0x18] sm:$0xff]
        %v266 = vld [vmem:[%s1 + $0x20] sm:$0xff]
        %v267 = vld [vmem:[%s1 + $0x28] sm:$0xff]
        %v268 = vld [vmem:[%s1 + $0x30] sm:$0xff]
        %v269 = vld [vmem:[%s1 + $0x38] sm:$0xff]
        %v270 = vld [vmem:[%s1 + $0x40] sm:$0xff]
        %v271 = vld [vmem:[%s1 + $0x48] sm:$0xff]
        %v272 = vld [vmem:[%s1 + $0x50] sm:$0xff]
        %v273 = vld [vmem:[%s1 + $0x58] sm:$0xff]
        %v274 = vld [vmem:[%s1 + $0x60] sm:$0xff]
        %v275 = vld [vmem:[%s1 + $0x68] sm:$0xff]
        %v276 = vld [vmem:[%s1 + $0x70] sm:$0xff]
        %v277 = vld [vmem:[%s1 + $0x78] sm:$0xff]
        %v278 = vld [vmem:[%s1 + $0x80] sm:$0xff]
        %v279 = vld [vmem:[%s1 + $0x88] sm:$0xff]
        %v280 = vld [vmem:[%s1 + $0x90] sm:$0xff]
        %v281 = vld [vmem:[%s1 + $0x98] sm:$0xff]
        %v282 = vld [vmem:[%s1 + $0xa0] sm:$0xff]
        %v283 = vld [vmem:[%s1 + $0xa8] sm:$0xff]
        %v284 = vld [vmem:[%s1 + $0xb0] sm:$0xff]
        %v285 = vld [vmem:[%s1 + $0xb8] sm:$0xff]
        %v286 = vld [vmem:[%s1 + $0xc0] sm:$0xff]
        %v287 = vld [vmem:[%s1 + $0xc8] sm:$0xff]
        %v288 = vld [vmem:[%s1 + $0xd0] sm:$0xff]
        %v289 = vld [vmem:[%s2] sm:$0x1]
        %v291 = vlaneseq
        %v292 = vshrl.u32 %v291, 7
        %v293 = vsub.s32 0, %v292
        %v294 = vrot.slane %v289, %v293
        %vm296 = vcmask 719872
        %v298 = vsel %vm296, %v260, 0
        %v301 = vsel %vm296, %v261, 0
        %303 = vmatprep.subr.mxu0 0.0
        %304 = vmatpush1.msra.mxu0 %v277
        %305 = vmatprep.subr.mxu0 0.0
        %306 = vmatpush1.msra.mxu0 %v276
        %307 = vmatprep.subr.mxu0 0.0
        %308 = vmatpush1.msra.mxu0 %v275
        %309 = vmatprep.subr.mxu0 0.0
        %310 = vmatpush1.msra.mxu0 %v274
        %311 = vmatprep.subr.mxu0 0.0
        %312 = vmatpush1.msra.mxu0 %v273
        %313 = vmatprep.subr.mxu0 0.0
        %314 = vmatpush1.msra.mxu0 %v272
        %315 = vmatprep.subr.mxu0 0.0
        %316 = vmatpush1.msra.mxu0 %v271
        %317 = vmatprep.subr.mxu0 0.0
        %318 = vmatpush1.msra.mxu0 %v270
        %319 = vmatprep.subr.mxu0 0.0
        %320 = vmatpush1.msra.mxu0 %v269
        %321 = vmatprep.subr.mxu0 0.0
        %322 = vmatpush1.msra.mxu0 %v268
        %323 = vmatprep.subr.mxu0 0.0
        %324 = vmatpush1.msra.mxu0 %v267
        %325 = vmatprep.subr.mxu0 0.0
        %326 = vmatpush1.msra.mxu0 %v266
        %327 = vmatprep.subr.mxu0 0.0
        %328 = vmatpush1.msra.mxu0 %v265
        %329 = vmatprep.subr.mxu0 0.0
        %330 = vmatpush1.msra.mxu0 %v264
        %331 = vmatprep.subr.mxu0 0.0
        %332 = vmatpush1.msra.mxu0 %v263
        %333 = vmatprep.subr.mxu0 0.0
        %334 = vmatpush1.msra.mxu0 %v262
        %335 = vmatprep.subr.mxu0 0.0
        %336 = vmatpush2.msra.mxu0 0.0
        %337 = vmatprep.subr.mxu0 0.0
        %338 = vmatpush2.msra.mxu0 0.0
        %339 = vmatprep.subr.mxu0 0.0
        %340 = vmatpush2.msra.mxu0 0.0
        %341 = vmatprep.subr.mxu0 0.0
        %342 = vmatpush2.msra.mxu0 0.0
        %343 = vmatprep.subr.mxu0 0.0
        %344 = vmatpush2.msra.mxu0 0.0
        %345 = vmatprep.subr.mxu0 0.0
        %346 = vmatpush2.msra.mxu0 %v288
        %347 = vmatprep.subr.mxu0 0.0
        %348 = vmatpush2.msra.mxu0 %v287
        %349 = vmatprep.subr.mxu0 0.0
        %350 = vmatpush2.msra.mxu0 %v286
        %351 = vmatprep.subr.mxu0 0.0
        %352 = vmatpush2.msra.mxu0 %v285
        %353 = vmatprep.subr.mxu0 0.0
        %354 = vmatpush2.msra.mxu0 %v284
        %355 = vmatprep.subr.mxu0 0.0
        %356 = vmatpush2.msra.mxu0 %v283
        %357 = vmatprep.subr.mxu0 0.0
        %358 = vmatpush2.msra.mxu0 %v282
        %359 = vmatprep.subr.mxu0 0.0
        %360 = vmatpush2.msra.mxu0 %v281
        %361 = vmatprep.subr.mxu0 0.0
        %362 = vmatpush2.msra.mxu0 %v280
        %363 = vmatprep.subr.mxu0 0.0
        %364 = vmatpush2.msra.mxu0 %v279
        %365 = vmatprep.subr.mxu0 0.0
        %366 = vmatpush2.msra.mxu0 %v278
        %367 = vmatprep.mubr.f32.mxu0 %v298
        %368 = vmatmul.mubr.f32.gmra.mxu0 %v257
        %v369 = vpop.f32.mrf.mxu0
        %v370 = vadd.f32 %v294, %v369
        %v371 = vpop.f32.mrf.mxu0
        %372 = vmatprep.mubr.f32.mxu0 %v301
        %373 = vmatmul.mubr.f32.gmra.mxu0 %v258
        %v374 = vpop.f32.mrf.mxu0
        %v375 = vadd.f32 %v294, %v374
        %v376 = vpop.f32.mrf.mxu0
        %377 = vdwg.mxu0
        %v378 = vmax.f32 %v370, 0.0
        %v379 = vmax.f32 %v375, 0.0
        %382 = vrot.lane.b32.xlu0 %v378, 4
        %v383 = vpop.permute.xlu0 %382
        %384 = vrot.lane.b32.xlu0 %v379, 4
        %v385 = vpop.permute.xlu0 %384
        %vm388 = vcmask 31744
        %v389 = vsel %vm388, 0.0, %v383
        %v390 = vsel %vm388, 0.0, %v385
        %vm391 = vcmask 556032
        %v392 = vsel %vm391, %v389, 0.0
        %v393 = vsel %vm391, %v390, 0.0
        %vm396 = vcmask 1040384
        %v397 = vrot.slane %v392, 7
        %v398 = vrot.slane %v393, 7
        %v399 = vsel %vm396, %v397, %v398
        %v403 = vsel %vm396, 0.0, %v397
        %v404 = vsel %vm396, %v398, 0.0
        %v407 = vrot.slane %v403, 1
        %v408 = vrot.slane %v399, 1
        %v409 = vsel %vm232, %v407, %v408
        %v410 = vrot.slane %v404, 1
        %v411 = vsel %vm232, %v408, %v410
        %412 = vrot.lane.b32.xlu0 %v409, 72
        %v413 = vpop.permute.xlu0 %412
        %414 = vrot.lane.b32.xlu0 %v411, 72
        %v415 = vpop.permute.xlu0 %414
        %v418 = vrot.slane %v403, 2
        %v419 = vrot.slane %v399, 2
        %v420 = vsel %vm244, %v418, %v419
        %v421 = vrot.slane %v404, 2
        %v422 = vsel %vm244, %v419, %v421
        %423 = vrot.lane.b32.xlu0 %v420, 16
        %v424 = vpop.permute.xlu0 %423
        %425 = vrot.lane.b32.xlu0 %v422, 16
        %v426 = vpop.permute.xlu0 %425
        %v429 = vsel %vm256, %v403, %v413
        %v430 = vsel %vm256, %v399, %v415
        %v431 = vsel %vm259, %v413, %v424
        %v432 = vsel %vm259, %v415, %v426
        %v433 = vld [vmem:[%s3] sm:$0xff]
        %v434 = vld [vmem:[%s3 + $0x8] sm:$0xff]
        %v435 = vld [vmem:[%s3 + $0x10] sm:$0xff]
        %v436 = vld [vmem:[%s3 + $0x18] sm:$0xff]
        %v437 = vld [vmem:[%s3 + $0x20] sm:$0xff]
        %v438 = vld [vmem:[%s3 + $0x28] sm:$0xff]
        %v439 = vld [vmem:[%s3 + $0x30] sm:$0xff]
        %v440 = vld [vmem:[%s3 + $0x38] sm:$0xff]
        %v441 = vld [vmem:[%s3 + $0x40] sm:$0xff]
        %v442 = vld [vmem:[%s3 + $0x48] sm:$0xff]
        %v443 = vld [vmem:[%s3 + $0x50] sm:$0xff]
        %v444 = vld [vmem:[%s3 + $0x58] sm:$0xff]
        %v445 = vld [vmem:[%s3 + $0x60] sm:$0xff]
        %v446 = vld [vmem:[%s3 + $0x68] sm:$0xff]
        %v447 = vld [vmem:[%s3 + $0x70] sm:$0xff]
        %v448 = vld [vmem:[%s3 + $0x78] sm:$0xff]
        %v449 = vld [vmem:[%s3 + $0x80] sm:$0xff]
        %v450 = vld [vmem:[%s3 + $0x88] sm:$0xff]
        %v451 = vld [vmem:[%s3 + $0x90] sm:$0xff]
        %v452 = vld [vmem:[%s3 + $0x98] sm:$0xff]
        %v453 = vld [vmem:[%s3 + $0xa0] sm:$0xff]
        %v454 = vld [vmem:[%s3 + $0xa8] sm:$0xff]
        %v455 = vld [vmem:[%s3 + $0xb0] sm:$0xff]
        %v456 = vld [vmem:[%s3 + $0xb8] sm:$0xff]
        %v457 = vld [vmem:[%s3 + $0xc0] sm:$0xff]
        %v458 = vld [vmem:[%s3 + $0xc8] sm:$0xff]
        %v459 = vld [vmem:[%s3 + $0xd0] sm:$0xff]
        %v460 = vld [vmem:[%s4] sm:$0x1]
        %v462 = vlaneseq
        %v463 = vshrl.u32 %v462, 7
        %v464 = vsub.s32 0, %v463
        %v465 = vrot.slane %v460, %v464
        %v468 = vsel %vm296, %v431, 0
        %v471 = vsel %vm296, %v432, 0
        %473 = vmatprep.subr.mxu0 0.0
        %474 = vmatpush1.msra.mxu0 %v448
        %475 = vmatprep.subr.mxu0 0.0
        %476 = vmatpush1.msra.mxu0 %v447
        %477 = vmatprep.subr.mxu0 0.0
        %478 = vmatpush1.msra.mxu0 %v446
        %479 = vmatprep.subr.mxu0 0.0
        %480 = vmatpush1.msra.mxu0 %v445
        %481 = vmatprep.subr.mxu0 0.0
        %482 = vmatpush1.msra.mxu0 %v444
        %483 = vmatprep.subr.mxu0 0.0
        %484 = vmatpush1.msra.mxu0 %v443
        %485 = vmatprep.subr.mxu0 0.0
        %486 = vmatpush1.msra.mxu0 %v442
        %487 = vmatprep.subr.mxu0 0.0
        %488 = vmatpush1.msra.mxu0 %v441
        %489 = vmatprep.subr.mxu0 0.0
        %490 = vmatpush1.msra.mxu0 %v440
        %491 = vmatprep.subr.mxu0 0.0
        %492 = vmatpush1.msra.mxu0 %v439
        %493 = vmatprep.subr.mxu0 0.0
        %494 = vmatpush1.msra.mxu0 %v438
        %495 = vmatprep.subr.mxu0 0.0
        %496 = vmatpush1.msra.mxu0 %v437
        %497 = vmatprep.subr.mxu0 0.0
        %498 = vmatpush1.msra.mxu0 %v436
        %499 = vmatprep.subr.mxu0 0.0
        %500 = vmatpush1.msra.mxu0 %v435
        %501 = vmatprep.subr.mxu0 0.0
        %502 = vmatpush1.msra.mxu0 %v434
        %503 = vmatprep.subr.mxu0 0.0
        %504 = vmatpush1.msra.mxu0 %v433
        %505 = vmatprep.subr.mxu0 0.0
        %506 = vmatpush2.msra.mxu0 0.0
        %507 = vmatprep.subr.mxu0 0.0
        %508 = vmatpush2.msra.mxu0 0.0
        %509 = vmatprep.subr.mxu0 0.0
        %510 = vmatpush2.msra.mxu0 0.0
        %511 = vmatprep.subr.mxu0 0.0
        %512 = vmatpush2.msra.mxu0 0.0
        %513 = vmatprep.subr.mxu0 0.0
        %514 = vmatpush2.msra.mxu0 0.0
        %515 = vmatprep.subr.mxu0 0.0
        %516 = vmatpush2.msra.mxu0 %v459
        %517 = vmatprep.subr.mxu0 0.0
        %518 = vmatpush2.msra.mxu0 %v458
        %519 = vmatprep.subr.mxu0 0.0
        %520 = vmatpush2.msra.mxu0 %v457
        %521 = vmatprep.subr.mxu0 0.0
        %522 = vmatpush2.msra.mxu0 %v456
        %523 = vmatprep.subr.mxu0 0.0
        %524 = vmatpush2.msra.mxu0 %v455
        %525 = vmatprep.subr.mxu0 0.0
        %526 = vmatpush2.msra.mxu0 %v454
        %527 = vmatprep.subr.mxu0 0.0
        %528 = vmatpush2.msra.mxu0 %v453
        %529 = vmatprep.subr.mxu0 0.0
        %530 = vmatpush2.msra.mxu0 %v452
        %531 = vmatprep.subr.mxu0 0.0
        %532 = vmatpush2.msra.mxu0 %v451
        %533 = vmatprep.subr.mxu0 0.0
        %534 = vmatpush2.msra.mxu0 %v450
        %535 = vmatprep.subr.mxu0 0.0
        %536 = vmatpush2.msra.mxu0 %v449
        %537 = vmatprep.mubr.f32.mxu0 %v468
        %538 = vmatmul.mubr.f32.gmra.mxu0 %v429
        %v539 = vpop.f32.mrf.mxu0
        %v540 = vadd.f32 %v465, %v539
        %v541 = vpop.f32.mrf.mxu0
        %542 = vmatprep.mubr.f32.mxu0 %v471
        %543 = vmatmul.mubr.f32.gmra.mxu0 %v430
        %v544 = vpop.f32.mrf.mxu0
        %v545 = vadd.f32 %v465, %v544
        %v546 = vpop.f32.mrf.mxu0
        %547 = vdwg.mxu0
        %v551 = vrot.slane %v223, 1
        %v552 = vrot.slane %v224, 1
        %v553 = vsel %vm232, %v551, %v552
        %v554 = vrot.slane %v225, 1
        %v555 = vsel %vm232, %v552, %v554
        %556 = vrot.lane.b32.xlu0 %v553, 124
        %v557 = vpop.permute.xlu0 %556
        %558 = vrot.lane.b32.xlu0 %v555, 124
        %v559 = vpop.permute.xlu0 %558
        %v562 = vadd.f32 %v540, %v557
        %v563 = vadd.f32 %v545, %v559
        %vm564 = vcmask 523264
        %565 = vst.msk [vmem:[%s217] sm:$0xff] %vm564, %v562
        %566 = vst.msk [vmem:[%s217 + $0x8] sm:$0xff] %vm564, %v563
        %s567 = sand.u32 %s137, 1
        %s568 = scalar_lea.sflag [#allocation3], %s567
        %s569 = sand.u32 %s137, 1
        %s570 = smul.addr %s569, 16
        %s571 = scalar_lea.vmem [#allocation2], %s570
        // Predicated region
        $region41: #{tpu_custom_call.1} parent=39 // pred_check
          %p572 = pneg %p147
        $region42: #{tpu_custom_call.1} parent=39 // pred_check_branch
          %574 = sbr.rel (%p572) target = $region44
        $region43: #{tpu_custom_call.1} parent=39 // pred_region
          %s576 = ssub.s32 256, 256
          %577 = vsyncadd %s568, %s576
          %s578 = smul.addr %s19, 2
          %s579 = smul.addr %s578, 128
          %s580 = scalar_lea.hbm %s5, %s579
          %s581 = sshll.u32 %s571, 4
          %s582 = int_to_ptr.vmem [resolvable:$true] %s581
          %587 = dma.vmem_to_hbm [thread:$0]  %s582, 256, %s580, %s568, 128, 128, 8
        $region44: #{tpu_custom_call.1} parent=39 // pred_fallthru
          _
      $region40: #{tpu_custom_call.1} parent=5 // pred_fallthru
        _
      %p588 = scmp.le.s32.totalorder 2, %s14
      // Predicated region
      $region45: #{tpu_custom_call.1} parent=5 // pred_check
        %p589 = pneg %p588
      $region46: #{tpu_custom_call.1} parent=5 // pred_check_branch
        %591 = sbr.rel (%p589) target = $region48
      $region47: #{tpu_custom_call.1} parent=5 // pred_region
        %s592 = ssub.s32 %s14, 2
        // Predicated region
        $region49: #{tpu_custom_call.1} parent=47 // pred_check
          %p593 = pneg %p153
        $region50: #{tpu_custom_call.1} parent=47 // pred_check_branch
          %595 = sbr.rel (%p593) target = $region52
        $region51: #{tpu_custom_call.1} parent=47 // pred_region
          %s596 = sand.u32 %s138, 1
          %s597 = scalar_lea.sflag [#allocation3], %s596
          %s598 = sand.u32 %s138, 1
          %s599 = smul.addr %s598, 16
          %s600 = scalar_lea.vmem [#allocation2], %s599
          %601 = dma.done %s597, 256
        $region52: #{tpu_custom_call.1} parent=47 // pred_fallthru
          _
      $region48: #{tpu_custom_call.1} parent=5 // pred_fallthru
        _
    $region6: #{tpu_custom_call.1} parent=1 // loop_footer
      %s18 = sadd.s32 1, %s14
    $region7: #{tpu_custom_call.1} parent=1 // loop_footer_branch
      %13 = sbr.rel target = $region3
    $region8: #{tpu_custom_call.1} parent=1 // loop_exit
      _
    %602 = vsyncpa [#allocation3], 1
    %s603 = scalar_lea.sflag [#allocation3], 1
    %604 = vsyncpa %s603, 1

</llo_original>
